<compile_context>
chip_gen: v6e
topology: v6e:2x2x1
jax: 0.10.0
libtpu: 0.0.40
codegen_flags: <defaults>
</compile_context>

<pallas_src>
import jax
import jax.numpy as jnp
from jax import lax
from jax.experimental import pallas as pl
from jax.experimental.pallas import tpu as pltpu


def _make_dwconv_kernel(W: int, RHW: int, use_halo: bool):
    """Kernel for one (1, RHW, TC) block holding RH = RHW // W whole image rows."""

    def kernel(*refs):
        if use_halo:
            x_ref, xu_ref, xd_ref, w_ref, o_ref, acc_ref = refs
        else:
            x_ref, w_ref, o_ref, acc_ref = refs

        cdt = x_ref.dtype                  # tap math in the activation dtype
        TC = x_ref.shape[2]

        def tap(t):                        # (1, TC) per-channel tap, lane aligned
            return w_ref[t].astype(cdt)

        def hrowsum(v, col, k0, k1, k2):
            # v: (rows*W, TC).  k0*v[n-1] + k1*v[n] + k2*v[n+1] with the image
            # left/right edges zeroed.  +-1 neighbours are sublane rolls (XLU);
            # wrap-around only ever lands on masked taps.
            n = v.shape[0]
            vl = jnp.where(col > 0, pltpu.roll(v, 1, axis=0), 0.0)
            vr = jnp.where(col < W - 1, pltpu.roll(v, n - 1, axis=0), 0.0)
            return vl * k0 + v * k1 + vr * k2

        x = x_ref[0]                                          # (RHW, TC)
        col = lax.broadcasted_iota(jnp.int32, (RHW, TC), 0)
        if RHW != W:
            col = col % W                                     # column within image row

        # Centre kernel row + bias -> f32 accumulator (temporaries die here).
        mid = hrowsum(x, col, tap(3), tap(4), tap(5))
        acc_ref[...] = mid.astype(jnp.float32) + w_ref[9]

        if RHW > W:
            # Top kernel row: source row r feeds output row r+1 (within tile).
            a = hrowsum(x, col, tap(0), tap(1), tap(2)).astype(jnp.float32)
            acc_ref[W:RHW, :] = acc_ref[W:RHW, :] + a[:RHW - W, :]
            # Bottom kernel row: source row r feeds output row r-1.
            c = hrowsum(x, col, tap(6), tap(7), tap(8)).astype(jnp.float32)
            acc_ref[:RHW - W, :] = acc_ref[:RHW - W, :] + c[W:RHW, :]

        if use_halo:
            t_idx = pl.program_id(2)
            col_h = lax.broadcasted_iota(jnp.int32, (W, TC), 0)

            @pl.when(t_idx > 0)                       # image row above this tile
            def _():
                up = hrowsum(xu_ref[0], col_h, tap(0), tap(1), tap(2))
                acc_ref[0:W, :] = acc_ref[0:W, :] + up.astype(jnp.float32)

            @pl.when(t_idx < pl.num_programs(2) - 1)  # image row below this tile
            def _():
                dn = hrowsum(xd_ref[0], col_h, tap(6), tap(7), tap(8))
                acc_ref[RHW - W:RHW, :] = (acc_ref[RHW - W:RHW, :]
                                           + dn.astype(jnp.float32))

        o_ref[0] = acc_ref[...].astype(o_ref.dtype)

    return kernel


def _pick_tiles(B, H, W, C, itemsize, block_bytes, min_grid_steps):
    # Channel tile: full C unless it splits into lane-aligned (128k) groups.
    TC = C
    if C % 128 == 0:
        for cand in (512, 384, 256, 128):
            if C % cand == 0:
                TC = cand
                break
    n_ct = C // TC

    # Row tile: whole image rows; halo blocks need W % 8 == 0.
    can_tile = (W % 8 == 0) and H > 1
    if not can_tile:
        return TC, H
    divisors = [d for d in range(1, H + 1) if H % d == 0]
    row_bytes = W * TC * itemsize
    fitting = [d for d in divisors if d * row_bytes <= block_bytes]
    RH = max(fitting) if fitting else 1
    # Keep enough "parallel" grid steps to feed both v7x cores / the pipeline.
    while B * n_ct * (H // RH) < min_grid_steps and RH > 1:
        smaller = [d for d in divisors if d < RH and d * row_bytes >= 8 * 1024]
        if not smaller:
            break
        RH = max(smaller)
    return TC, RH


def dwconv(x, H, W, weight, bias, *, block_bytes=2 << 20, min_grid_steps=8):
    """Depthwise 3x3 conv, stride 1, pad 1, groups=C (PyTorch DWConv.forward).

    x: (B, N, C) with N == H*W; weight: (C, 1, 3, 3) (PyTorch layout); bias: (C,).
    Returns (B, N, C) in x.dtype.  No wrapper-side relayout.
    """
    B, N, C = x.shape
    assert N == H * W
    itemsize = jnp.dtype(x.dtype).itemsize

    TC, RH = _pick_tiles(B, H, W, C, itemsize, block_bytes, min_grid_steps)
    RHW = RH * W
    n_ct, n_ht = C // TC, H // RH
    use_halo = n_ht > 1

    # Taps + bias as one (10, 1, C) f32 stream; tap t = kh*3 + kw, row 9 = bias.
    wb = jnp.concatenate(
        [jnp.transpose(weight.reshape(C, 9), (1, 0)), bias.reshape(1, C)],
        axis=0).astype(jnp.float32).reshape(10, 1, C)

    in_specs = [pl.BlockSpec((1, RHW, TC), lambda b, c, t: (b, t, c))]
    operands = [x]
    if use_halo:
        # One image row above / below the tile.  Block index is clamped so the
        # loads stay in-bounds; the border contributions are skipped in-kernel.
        in_specs += [
            pl.BlockSpec((1, W, TC),
                         lambda b, c, t: (b, jnp.maximum(t * RH - 1, 0), c)),
            pl.BlockSpec((1, W, TC),
                         lambda b, c, t: (b, jnp.minimum((t + 1) * RH, H - 1), c)),
        ]
        operands += [x, x]
    in_specs.append(pl.BlockSpec((10, 1, TC), lambda b, c, t: (0, 0, c)))
    operands.append(wb)

    # Explicit VMEM budget: double-buffered (in + halos + weights + out) plus
    # the f32 accumulator, with headroom.
    lanes = -(-TC // 128) * 128
    subl = -(-RHW // 8) * 8
    main_blk = subl * lanes * itemsize
    halo_blk = (-(-W // 8) * 8) * lanes * itemsize if use_halo else 0
    wgt_blk = 10 * 8 * lanes * 4
    acc_blk = subl * lanes * 4
    need = 2 * (2 * main_blk + 2 * halo_blk + wgt_blk) + acc_blk
    vmem_limit = int(min(64 << 20, max(16 << 20, 2 * need)))

    return pl.pallas_call(
        _make_dwconv_kernel(W, RHW, use_halo),
        out_shape=jax.ShapeDtypeStruct((B, N, C), x.dtype),
        grid_spec=pltpu.PrefetchScalarGridSpec(
            num_scalar_prefetch=0,
            grid=(B, n_ct, n_ht),
            in_specs=in_specs,
            out_specs=pl.BlockSpec((1, RHW, TC), lambda b, c, t: (b, t, c)),
            scratch_shapes=[pltpu.VMEM((RHW, TC), jnp.float32)],
        ),
        compiler_params=pltpu.CompilerParams(
            dimension_semantics=("parallel", "parallel", "parallel"),
            vmem_limit_bytes=vmem_limit),
    )(*operands)


def _reference_dwconv(x, H, W, weight, bias):
    """Pure-JAX reference via lax.conv_general_dilated (NCHW, groups=C)."""
    B, N, C = x.shape
    x_nchw = jnp.transpose(x, (0, 2, 1)).reshape(B, C, H, W).astype(jnp.float32)
    y = lax.conv_general_dilated(
        x_nchw, weight.astype(jnp.float32), window_strides=(1, 1),
        padding=((1, 1), (1, 1)), dimension_numbers=("NCHW", "OIHW", "NCHW"),
        feature_group_count=C)
    y = y + bias.reshape(1, C, 1, 1).astype(jnp.float32)
    return jnp.transpose(y.reshape(B, C, H * W), (0, 2, 1))


if __name__ == "__main__":
    key = jax.random.PRNGKey(0)
    B, C, Hh, Ww = 2, 32, 16, 16
    N = Hh * Ww

    kx, kw, kb = jax.random.split(key, 3)
    x = jax.random.normal(kx, (B, N, C), dtype=jnp.float32)
    # PyTorch Conv2d(dim, dim, 3, groups=dim): weight (dim, 1, 3, 3), bias (dim,)
    bound = 1.0 / (9.0 ** 0.5)
    weight = jax.random.uniform(kw, (C, 1, 3, 3), jnp.float32, -bound, bound)
    bias = jax.random.uniform(kb, (C,), jnp.float32, -bound, bound)

    out = jax.block_until_ready(dwconv(x, Hh, Ww, weight, bias))
    ref = _reference_dwconv(x, Hh, Ww, weight, bias)
    assert out.shape == (B, N, C)
    assert jnp.allclose(out, ref, atol=1e-5, rtol=1e-5), \
        float(jnp.max(jnp.abs(out - ref)))

    # bf16 activations exercise the reduced-precision tap-math path
    # (accumulation stays f32).
    x_bf = x.astype(jnp.bfloat16)
    out_bf = jax.block_until_ready(dwconv(x_bf, Hh, Ww, weight, bias))
    ref_bf = _reference_dwconv(x_bf.astype(jnp.float32), Hh, Ww, weight, bias)
    assert out_bf.dtype == jnp.bfloat16
    assert jnp.allclose(out_bf.astype(jnp.float32), ref_bf, atol=5e-2, rtol=5e-2)

    print("KERNEL_OK")
</pallas_src>

<mosaic_0001>
module attributes {stable_mosaic.version = 11 : i64} {
  func.func @kernel(%arg0: i32, %arg1: i32, %arg2: i32, %arg3: memref<1x64x32xf32, #tpu.memory_space<vmem>>, %arg4: memref<1x16x32xf32, #tpu.memory_space<vmem>>, %arg5: memref<1x16x32xf32, #tpu.memory_space<vmem>>, %arg6: memref<10x1x32xf32, #tpu.memory_space<vmem>>, %arg7: memref<1x64x32xf32, #tpu.memory_space<vmem>>, %arg8: memref<64x32xf32, #tpu.memory_space<vmem>>) attributes {dimension_semantics = [#tpu.dimension_semantics<parallel>, #tpu.dimension_semantics<parallel>, #tpu.dimension_semantics<parallel>], iteration_bounds = array<i64: 2, 1, 4>, scalar_prefetch = 0 : i64, scratch_operands = 1 : i64, tpu.core_type = #tpu.core_type<tc>, window_params = [{transform_indices = @transform_0, window_bounds = array<i64: 1, 64, 32>}, {transform_indices = @transform_1, window_bounds = array<i64: 1, 16, 32>}, {transform_indices = @transform_2, window_bounds = array<i64: 1, 16, 32>}, {transform_indices = @transform_3, window_bounds = array<i64: 10, 1, 32>}, {transform_indices = @transform_4, window_bounds = array<i64: 1, 64, 32>}]} {
    %c0 = arith.constant 0 : index
    %c0_0 = arith.constant 0 : index
    %c0_1 = arith.constant 0 : index
    %0 = vector.load %arg3[%c0, %c0_0, %c0_1] : memref<1x64x32xf32, #tpu.memory_space<vmem>>, vector<1x64x32xf32>
    %1 = vector.shape_cast %0 : vector<1x64x32xf32> to vector<64x32xf32>
    %2 = tpu.iota {dimensions = array<i32: 0>} : vector<64x32xi32>
    %c16_i32 = arith.constant 16 : i32
    %c0_i32 = arith.constant 0 : i32
    %3 = arith.cmpi eq, %c16_i32, %c0_i32 : i32
    %c1_i32 = arith.constant 1 : i32
    %4 = arith.select %3, %c1_i32, %c16_i32 : i32
    %5 = vector.broadcast %4 : i32 to vector<64x32xi32>
    %6 = arith.remsi %2, %5 : vector<64x32xi32>
    %c0_i32_2 = arith.constant 0 : i32
    %7 = vector.broadcast %c0_i32_2 : i32 to vector<64x32xi32>
    %8 = arith.cmpi ne, %6, %7 : vector<64x32xi32>
    %c0_i32_3 = arith.constant 0 : i32
    %9 = vector.broadcast %c0_i32_3 : i32 to vector<64x32xi32>
    %10 = arith.cmpi slt, %6, %9 : vector<64x32xi32>
    %c0_i32_4 = arith.constant 0 : i32
    %11 = arith.cmpi slt, %4, %c0_i32_4 : i32
    %12 = vector.broadcast %11 : i1 to vector<64x32xi1>
    %13 = vector.broadcast %12 : vector<64x32xi1> to vector<64x32xi1>
    %14 = arith.xori %10, %13 : vector<64x32xi1>
    %15 = arith.andi %14, %8 : vector<64x32xi1>
    %16 = vector.broadcast %4 : i32 to vector<64x32xi32>
    %17 = arith.addi %6, %16 : vector<64x32xi32>
    %18 = arith.select %15, %17, %6 : vector<64x32xi1>, vector<64x32xi32>
    %c3 = arith.constant 3 : index
    %c0_5 = arith.constant 0 : index
    %c0_6 = arith.constant 0 : index
    %19 = vector.load %arg6[%c3, %c0_5, %c0_6] : memref<10x1x32xf32, #tpu.memory_space<vmem>>, vector<1x1x32xf32>
    %20 = vector.shape_cast %19 : vector<1x1x32xf32> to vector<1x32xf32>
    %c4 = arith.constant 4 : index
    %c0_7 = arith.constant 0 : index
    %c0_8 = arith.constant 0 : index
    %21 = vector.load %arg6[%c4, %c0_7, %c0_8] : memref<10x1x32xf32, #tpu.memory_space<vmem>>, vector<1x1x32xf32>
    %22 = vector.shape_cast %21 : vector<1x1x32xf32> to vector<1x32xf32>
    %c5 = arith.constant 5 : index
    %c0_9 = arith.constant 0 : index
    %c0_10 = arith.constant 0 : index
    %23 = vector.load %arg6[%c5, %c0_9, %c0_10] : memref<10x1x32xf32, #tpu.memory_space<vmem>>, vector<1x1x32xf32>
    %24 = vector.shape_cast %23 : vector<1x1x32xf32> to vector<1x32xf32>
    %c0_i32_11 = arith.constant 0 : i32
    %25 = vector.broadcast %c0_i32_11 : i32 to vector<64x32xi32>
    %26 = arith.cmpi sgt, %18, %25 : vector<64x32xi32>
    %c1_i32_12 = arith.constant 1 : i32
    %27 = tpu.dynamic_rotate %1 by %c1_i32_12 dim 0 : vector<64x32xf32>, i32 -> vector<64x32xf32>
    %cst = arith.constant 0.000000e+00 : f32
    %28 = vector.broadcast %cst : f32 to vector<64x32xf32>
    %29 = arith.select %26, %27, %28 : vector<64x32xi1>, vector<64x32xf32>
    %c15_i32 = arith.constant 15 : i32
    %30 = vector.broadcast %c15_i32 : i32 to vector<64x32xi32>
    %31 = arith.cmpi slt, %18, %30 : vector<64x32xi32>
    %c63_i32 = arith.constant 63 : i32
    %32 = tpu.dynamic_rotate %1 by %c63_i32 dim 0 : vector<64x32xf32>, i32 -> vector<64x32xf32>
    %cst_13 = arith.constant 0.000000e+00 : f32
    %33 = vector.broadcast %cst_13 : f32 to vector<64x32xf32>
    %34 = arith.select %31, %32, %33 : vector<64x32xi1>, vector<64x32xf32>
    %35 = vector.broadcast %20 : vector<1x32xf32> to vector<64x32xf32>
    %36 = arith.mulf %29, %35 : vector<64x32xf32>
    %37 = vector.broadcast %22 : vector<1x32xf32> to vector<64x32xf32>
    %38 = arith.mulf %1, %37 : vector<64x32xf32>
    %39 = arith.addf %36, %38 : vector<64x32xf32>
    %40 = vector.broadcast %24 : vector<1x32xf32> to vector<64x32xf32>
    %41 = arith.mulf %34, %40 : vector<64x32xf32>
    %42 = arith.addf %39, %41 : vector<64x32xf32>
    %c9 = arith.constant 9 : index
    %c0_14 = arith.constant 0 : index
    %c0_15 = arith.constant 0 : index
    %43 = vector.load %arg6[%c9, %c0_14, %c0_15] : memref<10x1x32xf32, #tpu.memory_space<vmem>>, vector<1x1x32xf32>
    %44 = vector.shape_cast %43 : vector<1x1x32xf32> to vector<1x32xf32>
    %45 = vector.broadcast %44 : vector<1x32xf32> to vector<64x32xf32>
    %46 = arith.addf %42, %45 : vector<64x32xf32>
    %c0_16 = arith.constant 0 : index
    %c0_17 = arith.constant 0 : index
    %47 = vector.load %arg8[%c0_16, %c0_17] : memref<64x32xf32, #tpu.memory_space<vmem>>, vector<64x32xf32>
    tpu.vector_store %arg8[%c0_16, %c0_17], %46 {strides = array<i32>} : memref<64x32xf32, #tpu.memory_space<vmem>>, vector<64x32xf32>,
    %c0_18 = arith.constant 0 : index
    %c0_19 = arith.constant 0 : index
    %c0_20 = arith.constant 0 : index
    %48 = vector.load %arg6[%c0_18, %c0_19, %c0_20] : memref<10x1x32xf32, #tpu.memory_space<vmem>>, vector<1x1x32xf32>
    %49 = vector.shape_cast %48 : vector<1x1x32xf32> to vector<1x32xf32>
    %c1 = arith.constant 1 : index
    %c0_21 = arith.constant 0 : index
    %c0_22 = arith.constant 0 : index
    %50 = vector.load %arg6[%c1, %c0_21, %c0_22] : memref<10x1x32xf32, #tpu.memory_space<vmem>>, vector<1x1x32xf32>
    %51 = vector.shape_cast %50 : vector<1x1x32xf32> to vector<1x32xf32>
    %c2 = arith.constant 2 : index
    %c0_23 = arith.constant 0 : index
    %c0_24 = arith.constant 0 : index
    %52 = vector.load %arg6[%c2, %c0_23, %c0_24] : memref<10x1x32xf32, #tpu.memory_space<vmem>>, vector<1x1x32xf32>
    %53 = vector.shape_cast %52 : vector<1x1x32xf32> to vector<1x32xf32>
    %c0_i32_25 = arith.constant 0 : i32
    %54 = vector.broadcast %c0_i32_25 : i32 to vector<64x32xi32>
    %55 = arith.cmpi sgt, %18, %54 : vector<64x32xi32>
    %c1_i32_26 = arith.constant 1 : i32
    %56 = tpu.dynamic_rotate %1 by %c1_i32_26 dim 0 : vector<64x32xf32>, i32 -> vector<64x32xf32>
    %cst_27 = arith.constant 0.000000e+00 : f32
    %57 = vector.broadcast %cst_27 : f32 to vector<64x32xf32>
    %58 = arith.select %55, %56, %57 : vector<64x32xi1>, vector<64x32xf32>
    %c15_i32_28 = arith.constant 15 : i32
    %59 = vector.broadcast %c15_i32_28 : i32 to vector<64x32xi32>
    %60 = arith.cmpi slt, %18, %59 : vector<64x32xi32>
    %c63_i32_29 = arith.constant 63 : i32
    %61 = tpu.dynamic_rotate %1 by %c63_i32_29 dim 0 : vector<64x32xf32>, i32 -> vector<64x32xf32>
    %cst_30 = arith.constant 0.000000e+00 : f32
    %62 = vector.broadcast %cst_30 : f32 to vector<64x32xf32>
    %63 = arith.select %60, %61, %62 : vector<64x32xi1>, vector<64x32xf32>
    %64 = vector.broadcast %49 : vector<1x32xf32> to vector<64x32xf32>
    %65 = arith.mulf %58, %64 : vector<64x32xf32>
    %66 = vector.broadcast %51 : vector<1x32xf32> to vector<64x32xf32>
    %67 = arith.mulf %1, %66 : vector<64x32xf32>
    %68 = arith.addf %65, %67 : vector<64x32xf32>
    %69 = vector.broadcast %53 : vector<1x32xf32> to vector<64x32xf32>
    %70 = arith.mulf %63, %69 : vector<64x32xf32>
    %71 = arith.addf %68, %70 : vector<64x32xf32>
    %c16 = arith.constant 16 : index
    %c0_31 = arith.constant 0 : index
    %72 = vector.load %arg8[%c16, %c0_31] : memref<64x32xf32, #tpu.memory_space<vmem>>, vector<48x32xf32>
    %73 = vector.extract_strided_slice %71 {offsets = [0, 0], sizes = [48, 32], strides = [1, 1]} : vector<64x32xf32> to vector<48x32xf32>
    %74 = arith.addf %72, %73 : vector<48x32xf32>
    %c16_32 = arith.constant 16 : index
    %c0_33 = arith.constant 0 : index
    %75 = vector.load %arg8[%c16_32, %c0_33] : memref<64x32xf32, #tpu.memory_space<vmem>>, vector<48x32xf32>
    tpu.vector_store %arg8[%c16_32, %c0_33], %74 {strides = array<i32>} : memref<64x32xf32, #tpu.memory_space<vmem>>, vector<48x32xf32>,
    %c6 = arith.constant 6 : index
    %c0_34 = arith.constant 0 : index
    %c0_35 = arith.constant 0 : index
    %76 = vector.load %arg6[%c6, %c0_34, %c0_35] : memref<10x1x32xf32, #tpu.memory_space<vmem>>, vector<1x1x32xf32>
    %77 = vector.shape_cast %76 : vector<1x1x32xf32> to vector<1x32xf32>
    %c7 = arith.constant 7 : index
    %c0_36 = arith.constant 0 : index
    %c0_37 = arith.constant 0 : index
    %78 = vector.load %arg6[%c7, %c0_36, %c0_37] : memref<10x1x32xf32, #tpu.memory_space<vmem>>, vector<1x1x32xf32>
    %79 = vector.shape_cast %78 : vector<1x1x32xf32> to vector<1x32xf32>
    %c8 = arith.constant 8 : index
    %c0_38 = arith.constant 0 : index
    %c0_39 = arith.constant 0 : index
    %80 = vector.load %arg6[%c8, %c0_38, %c0_39] : memref<10x1x32xf32, #tpu.memory_space<vmem>>, vector<1x1x32xf32>
    %81 = vector.shape_cast %80 : vector<1x1x32xf32> to vector<1x32xf32>
    %c0_i32_40 = arith.constant 0 : i32
    %82 = vector.broadcast %c0_i32_40 : i32 to vector<64x32xi32>
    %83 = arith.cmpi sgt, %18, %82 : vector<64x32xi32>
    %c1_i32_41 = arith.constant 1 : i32
    %84 = tpu.dynamic_rotate %1 by %c1_i32_41 dim 0 : vector<64x32xf32>, i32 -> vector<64x32xf32>
    %cst_42 = arith.constant 0.000000e+00 : f32
    %85 = vector.broadcast %cst_42 : f32 to vector<64x32xf32>
    %86 = arith.select %83, %84, %85 : vector<64x32xi1>, vector<64x32xf32>
    %c15_i32_43 = arith.constant 15 : i32
    %87 = vector.broadcast %c15_i32_43 : i32 to vector<64x32xi32>
    %88 = arith.cmpi slt, %18, %87 : vector<64x32xi32>
    %c63_i32_44 = arith.constant 63 : i32
    %89 = tpu.dynamic_rotate %1 by %c63_i32_44 dim 0 : vector<64x32xf32>, i32 -> vector<64x32xf32>
    %cst_45 = arith.constant 0.000000e+00 : f32
    %90 = vector.broadcast %cst_45 : f32 to vector<64x32xf32>
    %91 = arith.select %88, %89, %90 : vector<64x32xi1>, vector<64x32xf32>
    %92 = vector.broadcast %77 : vector<1x32xf32> to vector<64x32xf32>
    %93 = arith.mulf %86, %92 : vector<64x32xf32>
    %94 = vector.broadcast %79 : vector<1x32xf32> to vector<64x32xf32>
    %95 = arith.mulf %1, %94 : vector<64x32xf32>
    %96 = arith.addf %93, %95 : vector<64x32xf32>
    %97 = vector.broadcast %81 : vector<1x32xf32> to vector<64x32xf32>
    %98 = arith.mulf %91, %97 : vector<64x32xf32>
    %99 = arith.addf %96, %98 : vector<64x32xf32>
    %c0_46 = arith.constant 0 : index
    %c0_47 = arith.constant 0 : index
    %100 = vector.load %arg8[%c0_46, %c0_47] : memref<64x32xf32, #tpu.memory_space<vmem>>, vector<48x32xf32>
    %101 = vector.extract_strided_slice %99 {offsets = [16, 0], sizes = [48, 32], strides = [1, 1]} : vector<64x32xf32> to vector<48x32xf32>
    %102 = arith.addf %100, %101 : vector<48x32xf32>
    %c0_48 = arith.constant 0 : index
    %c0_49 = arith.constant 0 : index
    %103 = vector.load %arg8[%c0_48, %c0_49] : memref<64x32xf32, #tpu.memory_space<vmem>>, vector<48x32xf32>
    tpu.vector_store %arg8[%c0_48, %c0_49], %102 {strides = array<i32>} : memref<64x32xf32, #tpu.memory_space<vmem>>, vector<48x32xf32>,
    %104 = tpu.iota {dimensions = array<i32: 0>} : vector<16x32xi32>
    %c0_i32_50 = arith.constant 0 : i32
    %105 = arith.cmpi sgt, %arg2, %c0_i32_50 : i32
    %106 = arith.extui %105 : i1 to i32
    %c0_i32_51 = arith.constant 0 : i32
    %107 = arith.cmpi ne, %106, %c0_i32_51 : i32
    scf.if %107 {
      %c0_58 = arith.constant 0 : index
      %c0_59 = arith.constant 0 : index
      %c0_60 = arith.constant 0 : index
      %115 = vector.load %arg4[%c0_58, %c0_59, %c0_60] : memref<1x16x32xf32, #tpu.memory_space<vmem>>, vector<1x16x32xf32>
      %116 = vector.shape_cast %115 : vector<1x16x32xf32> to vector<16x32xf32>
      %c0_61 = arith.constant 0 : index
      %c0_62 = arith.constant 0 : index
      %c0_63 = arith.constant 0 : index
      %117 = vector.load %arg6[%c0_61, %c0_62, %c0_63] : memref<10x1x32xf32, #tpu.memory_space<vmem>>, vector<1x1x32xf32>
      %118 = vector.shape_cast %117 : vector<1x1x32xf32> to vector<1x32xf32>
      %c1_64 = arith.constant 1 : index
      %c0_65 = arith.constant 0 : index
      %c0_66 = arith.constant 0 : index
      %119 = vector.load %arg6[%c1_64, %c0_65, %c0_66] : memref<10x1x32xf32, #tpu.memory_space<vmem>>, vector<1x1x32xf32>
      %120 = vector.shape_cast %119 : vector<1x1x32xf32> to vector<1x32xf32>
      %c2_67 = arith.constant 2 : index
      %c0_68 = arith.constant 0 : index
      %c0_69 = arith.constant 0 : index
      %121 = vector.load %arg6[%c2_67, %c0_68, %c0_69] : memref<10x1x32xf32, #tpu.memory_space<vmem>>, vector<1x1x32xf32>
      %122 = vector.shape_cast %121 : vector<1x1x32xf32> to vector<1x32xf32>
      %c0_i32_70 = arith.constant 0 : i32
      %123 = vector.broadcast %c0_i32_70 : i32 to vector<16x32xi32>
      %124 = arith.cmpi sgt, %104, %123 : vector<16x32xi32>
      %c1_i32_71 = arith.constant 1 : i32
      %125 = tpu.dynamic_rotate %116 by %c1_i32_71 dim 0 : vector<16x32xf32>, i32 -> vector<16x32xf32>
      %cst_72 = arith.constant 0.000000e+00 : f32
      %126 = vector.broadcast %cst_72 : f32 to vector<16x32xf32>
      %127 = arith.select %124, %125, %126 : vector<16x32xi1>, vector<16x32xf32>
      %c15_i32_73 = arith.constant 15 : i32
      %128 = vector.broadcast %c15_i32_73 : i32 to vector<16x32xi32>
      %129 = arith.cmpi slt, %104, %128 : vector<16x32xi32>
      %c15_i32_74 = arith.constant 15 : i32
      %130 = tpu.dynamic_rotate %116 by %c15_i32_74 dim 0 : vector<16x32xf32>, i32 -> vector<16x32xf32>
      %cst_75 = arith.constant 0.000000e+00 : f32
      %131 = vector.broadcast %cst_75 : f32 to vector<16x32xf32>
      %132 = arith.select %129, %130, %131 : vector<16x32xi1>, vector<16x32xf32>
      %133 = vector.broadcast %118 : vector<1x32xf32> to vector<16x32xf32>
      %134 = arith.mulf %127, %133 : vector<16x32xf32>
      %135 = vector.broadcast %120 : vector<1x32xf32> to vector<16x32xf32>
      %136 = arith.mulf %116, %135 : vector<16x32xf32>
      %137 = arith.addf %134, %136 : vector<16x32xf32>
      %138 = vector.broadcast %122 : vector<1x32xf32> to vector<16x32xf32>
      %139 = arith.mulf %132, %138 : vector<16x32xf32>
      %140 = arith.addf %137, %139 : vector<16x32xf32>
      %c0_76 = arith.constant 0 : index
      %c0_77 = arith.constant 0 : index
      %141 = vector.load %arg8[%c0_76, %c0_77] : memref<64x32xf32, #tpu.memory_space<vmem>>, vector<16x32xf32>
      %142 = arith.addf %141, %140 : vector<16x32xf32>
      %c0_78 = arith.constant 0 : index
      %c0_79 = arith.constant 0 : index
      %143 = vector.load %arg8[%c0_78, %c0_79] : memref<64x32xf32, #tpu.memory_space<vmem>>, vector<16x32xf32>
      tpu.vector_store %arg8[%c0_78, %c0_79], %142 {strides = array<i32>} : memref<64x32xf32, #tpu.memory_space<vmem>>, vector<16x32xf32>,
    } else {
    }
    %c3_i32 = arith.constant 3 : i32
    %108 = arith.cmpi slt, %arg2, %c3_i32 : i32
    %109 = arith.extui %108 : i1 to i32
    %c0_i32_52 = arith.constant 0 : i32
    %110 = arith.cmpi ne, %109, %c0_i32_52 : i32
    scf.if %110 {
      %c0_58 = arith.constant 0 : index
      %c0_59 = arith.constant 0 : index
      %c0_60 = arith.constant 0 : index
      %115 = vector.load %arg5[%c0_58, %c0_59, %c0_60] : memref<1x16x32xf32, #tpu.memory_space<vmem>>, vector<1x16x32xf32>
      %116 = vector.shape_cast %115 : vector<1x16x32xf32> to vector<16x32xf32>
      %c6_61 = arith.constant 6 : index
      %c0_62 = arith.constant 0 : index
      %c0_63 = arith.constant 0 : index
      %117 = vector.load %arg6[%c6_61, %c0_62, %c0_63] : memref<10x1x32xf32, #tpu.memory_space<vmem>>, vector<1x1x32xf32>
      %118 = vector.shape_cast %117 : vector<1x1x32xf32> to vector<1x32xf32>
      %c7_64 = arith.constant 7 : index
      %c0_65 = arith.constant 0 : index
      %c0_66 = arith.constant 0 : index
      %119 = vector.load %arg6[%c7_64, %c0_65, %c0_66] : memref<10x1x32xf32, #tpu.memory_space<vmem>>, vector<1x1x32xf32>
      %120 = vector.shape_cast %119 : vector<1x1x32xf32> to vector<1x32xf32>
      %c8_67 = arith.constant 8 : index
      %c0_68 = arith.constant 0 : index
      %c0_69 = arith.constant 0 : index
      %121 = vector.load %arg6[%c8_67, %c0_68, %c0_69] : memref<10x1x32xf32, #tpu.memory_space<vmem>>, vector<1x1x32xf32>
      %122 = vector.shape_cast %121 : vector<1x1x32xf32> to vector<1x32xf32>
      %c0_i32_70 = arith.constant 0 : i32
      %123 = vector.broadcast %c0_i32_70 : i32 to vector<16x32xi32>
      %124 = arith.cmpi sgt, %104, %123 : vector<16x32xi32>
      %c1_i32_71 = arith.constant 1 : i32
      %125 = tpu.dynamic_rotate %116 by %c1_i32_71 dim 0 : vector<16x32xf32>, i32 -> vector<16x32xf32>
      %cst_72 = arith.constant 0.000000e+00 : f32
      %126 = vector.broadcast %cst_72 : f32 to vector<16x32xf32>
      %127 = arith.select %124, %125, %126 : vector<16x32xi1>, vector<16x32xf32>
      %c15_i32_73 = arith.constant 15 : i32
      %128 = vector.broadcast %c15_i32_73 : i32 to vector<16x32xi32>
      %129 = arith.cmpi slt, %104, %128 : vector<16x32xi32>
      %c15_i32_74 = arith.constant 15 : i32
      %130 = tpu.dynamic_rotate %116 by %c15_i32_74 dim 0 : vector<16x32xf32>, i32 -> vector<16x32xf32>
      %cst_75 = arith.constant 0.000000e+00 : f32
      %131 = vector.broadcast %cst_75 : f32 to vector<16x32xf32>
      %132 = arith.select %129, %130, %131 : vector<16x32xi1>, vector<16x32xf32>
      %133 = vector.broadcast %118 : vector<1x32xf32> to vector<16x32xf32>
      %134 = arith.mulf %127, %133 : vector<16x32xf32>
      %135 = vector.broadcast %120 : vector<1x32xf32> to vector<16x32xf32>
      %136 = arith.mulf %116, %135 : vector<16x32xf32>
      %137 = arith.addf %134, %136 : vector<16x32xf32>
      %138 = vector.broadcast %122 : vector<1x32xf32> to vector<16x32xf32>
      %139 = arith.mulf %132, %138 : vector<16x32xf32>
      %140 = arith.addf %137, %139 : vector<16x32xf32>
      %c48 = arith.constant 48 : index
      %c0_76 = arith.constant 0 : index
      %141 = vector.load %arg8[%c48, %c0_76] : memref<64x32xf32, #tpu.memory_space<vmem>>, vector<16x32xf32>
      %142 = arith.addf %141, %140 : vector<16x32xf32>
      %c48_77 = arith.constant 48 : index
      %c0_78 = arith.constant 0 : index
      %143 = vector.load %arg8[%c48_77, %c0_78] : memref<64x32xf32, #tpu.memory_space<vmem>>, vector<16x32xf32>
      tpu.vector_store %arg8[%c48_77, %c0_78], %142 {strides = array<i32>} : memref<64x32xf32, #tpu.memory_space<vmem>>, vector<16x32xf32>,
    } else {
    }
    %c0_53 = arith.constant 0 : index
    %c0_54 = arith.constant 0 : index
    %111 = vector.load %arg8[%c0_53, %c0_54] : memref<64x32xf32, #tpu.memory_space<vmem>>, vector<64x32xf32>
    %c0_55 = arith.constant 0 : index
    %c0_56 = arith.constant 0 : index
    %c0_57 = arith.constant 0 : index
    %112 = vector.load %arg7[%c0_55, %c0_56, %c0_57] : memref<1x64x32xf32, #tpu.memory_space<vmem>>, vector<1x64x32xf32>
    %113 = vector.shape_cast %112 : vector<1x64x32xf32> to vector<64x32xf32>
    %114 = vector.shape_cast %111 : vector<64x32xf32> to vector<1x64x32xf32>
    tpu.vector_store %arg7[%c0_55, %c0_56, %c0_57], %114 {strides = array<i32>} : memref<1x64x32xf32, #tpu.memory_space<vmem>>, vector<1x64x32xf32>,
    return
  }
  func.func @transform_0(%arg0: i32, %arg1: i32, %arg2: i32) -> (i32, i32, i32) {
    %c0_i32 = arith.constant 0 : i32
    return %arg0, %arg2, %arg1 : i32, i32, i32
  }
  func.func @transform_1(%arg0: i32, %arg1: i32, %arg2: i32) -> (i32, i32, i32) {
    %c4_i32 = arith.constant 4 : i32
    %0 = arith.muli %arg2, %c4_i32 : i32
    %c1_i32 = arith.constant 1 : i32
    %1 = arith.subi %0, %c1_i32 : i32
    %c0_i32 = arith.constant 0 : i32
    %2 = arith.maxsi %1, %c0_i32 : i32
    %c0_i32_0 = arith.constant 0 : i32
    return %arg0, %2, %arg1 : i32, i32, i32
  }
  func.func @transform_2(%arg0: i32, %arg1: i32, %arg2: i32) -> (i32, i32, i32) {
    %c1_i32 = arith.constant 1 : i32
    %0 = arith.addi %arg2, %c1_i32 : i32
    %c4_i32 = arith.constant 4 : i32
    %1 = arith.muli %0, %c4_i32 : i32
    %c15_i32 = arith.constant 15 : i32
    %2 = arith.minsi %1, %c15_i32 : i32
    %c0_i32 = arith.constant 0 : i32
    return %arg0, %2, %arg1 : i32, i32, i32
  }
  func.func @transform_3(%arg0: i32, %arg1: i32, %arg2: i32) -> (i32, i32, i32) {
    %c0_i32 = arith.constant 0 : i32
    %c0_i32_0 = arith.constant 0 : i32
    %c0_i32_1 = arith.constant 0 : i32
    return %c0_i32, %c0_i32_0, %arg1 : i32, i32, i32
  }
  func.func @transform_4(%arg0: i32, %arg1: i32, %arg2: i32) -> (i32, i32, i32) {
    %c0_i32 = arith.constant 0 : i32
    return %arg0, %arg2, %arg1 : i32, i32, i32
  }
}

</mosaic_0001>

<llo_original>
// kernel: tpu_custom_call.1
$region0: #{tpu_custom_call.1}
  #allocation0 [shape = 'u32[]', space=smem, size = 0x4, offset = 0x4, fixed_abs, tag = 'smem constant byte address 0x4 - core index']
  #allocation1 [shape = 'u32[144,128]{1,0:T(1,128)}', space=vmem, size = 0x12000, scoped, tag = 'internal scratch']
  #allocation2 [shape = 'f32[64,32]{1,0:T(8,128)}', space=vmem, size = 0x8000, scoped, tag = 'scratch operand']
  %s0 = inlined_call_operand.vmem [shape: f32[2,256,32], index: 0, kind: input, shape index: {}]
  %s1 = inlined_call_operand.vmem [shape: f32[2,256,32], index: 1, kind: input, shape index: {}]
  %s2 = inlined_call_operand.vmem [shape: f32[2,256,32], index: 2, kind: input, shape index: {}]
  %s3 = inlined_call_operand.vmem [shape: f32[10,1,32], index: 3, kind: input, shape index: {}]
  %s4 = inlined_call_operand.vmem [shape: f32[2,256,32], index: 4, kind: output, shape index: {}]
  %s5 = sld [smem:[#allocation0]]
  $region57: #{tpu_custom_call.1} parent=0
    _
  %s7 = ssub.s32 1, %s5
  %s8 = scalar_select 0, %s7, %s5
  loop: start=0, step=1, limit=10
  $region2: #{tpu_custom_call.1} parent=0 // loop_pre_header
    _
  $region3: #{tpu_custom_call.1} parent=0 // loop_header
    %s10 = sphi 0, %s14
    %p11 = scmp.ge.s32.totalorder %s10, 10
    %s17 = sphi 0, %s36
    %s18 = sphi 0, %s32
    %s19 = sphi 0, %s28
    %s20 = sphi 0, %s17
    %s21 = sphi 0, %s18
    %s22 = sphi 0, %s19
    %s23 = sphi 0, %s20
    %s24 = sphi 0, %s21
    %s25 = sphi 0, %s22
    %s43 = sphi 0, %s45
    %s46 = sphi 0, %s43
    %s47 = sphi 0, %s46
    %s63 = sphi 0, %s47
    %s81 = sphi 0, %s83
    %s84 = sphi 0, %s81
    %s85 = sphi 0, %s84
    %s101 = sphi 0, %s85
    %s119 = sphi 0, %s121
    %s122 = sphi 0, %s119
    %s123 = sphi 0, %s122
    %s139 = sphi 0, %s123
    %s145 = sphi 0, %s147
    %s148 = sphi 0, %s145
    %s149 = sphi 0, %s148
    %s165 = sphi 0, %s149
    %s175 = sphi 0, %s177
    %s178 = sphi 0, %s175
    %s179 = sphi 0, %s178
    %s195 = sphi 0, %s179
  $region4: #{tpu_custom_call.1} parent=0 // loop_header_branch
    %13 = sbr.rel (%p11) target = $region8
  $region5: #{tpu_custom_call.1} parent=0 // loop_body
    %s15 = ssub.s32 %s10, 1
    %s16 = ssub.s32 %s10, 2
    %s26 = sadd.s32 1, %s19
    %p27 = scmp.ge.s32.totalorder %s26, 4
    %s28 = scalar_select %p27, 0, %s26
    %s29 = sadd.s32 1, %s18
    %s30 = scalar_select %p27, %s29, %s18
    %p31 = scmp.ge.s32.totalorder %s30, 1
    %s32 = scalar_select %p31, 0, %s30
    %s33 = sadd.s32 1, %s17
    %s34 = scalar_select %p31, %s33, %s17
    %p35 = scmp.ge.s32.totalorder %s34, 2
    %s36 = scalar_select %p35, 0, %s34
    %s37 = ssub.s32 %s17, %s36
    %s38 = ssub.s32 %s19, %s28
    %s39 = sor.u32 %s37, %s38
    %s40 = ssub.s32 %s18, %s32
    %s41 = sor.u32 %s39, %s40
    %p42 = scmp.eq.s32.totalorder %s41, 0
    %s44 = sadd.s32 %s43, 1
    %s45 = scalar_select %p42, %s43, %s44
    %p48 = pneg %p42
    %p49 = scmp.eq.s32.totalorder %s10, 7
    %p50 = por %p48, %p49
    %p51 = scmp.ne.s32.totalorder %s43, %s46
    %p52 = scmp.eq.s32.totalorder %s10, 0
    %p53 = por %p51, %p52
    %p54 = scmp.ne.s32.totalorder %s43, %s46
    %p55 = scmp.eq.s32.totalorder %s15, 7
    %p56 = por %p54, %p55
    %p57 = scmp.ne.s32.totalorder %s46, %s47
    %p58 = scmp.eq.s32.totalorder %s15, 0
    %p59 = por %p57, %p58
    %p60 = scmp.ne.s32.totalorder %s46, %s47
    %p61 = scmp.eq.s32.totalorder %s16, 7
    %p62 = por %p60, %p61
    %p64 = scmp.ne.s32.totalorder %s47, %s63
    %p65 = scmp.eq.s32.totalorder %s16, 0
    %p66 = por %p64, %p65
    %s67 = smul.u32 %s19, 4
    %s68 = ssub.s32 %s67, 1
    %p69 = scmp.gt.s32.totalorder %s68, 0
    %s70 = scalar_select %p69, %s68, 0
    %s71 = smul.u32 %s28, 4
    %s72 = ssub.s32 %s71, 1
    %p73 = scmp.gt.s32.totalorder %s72, 0
    %s74 = scalar_select %p73, %s72, 0
    %s75 = ssub.s32 %s17, %s36
    %s76 = ssub.s32 %s70, %s74
    %s77 = sor.u32 %s75, %s76
    %s78 = ssub.s32 %s18, %s32
    %s79 = sor.u32 %s77, %s78
    %p80 = scmp.eq.s32.totalorder %s79, 0
    %s82 = sadd.s32 %s81, 1
    %s83 = scalar_select %p80, %s81, %s82
    %p86 = pneg %p80
    %p87 = scmp.eq.s32.totalorder %s10, 7
    %p88 = por %p86, %p87
    %p89 = scmp.ne.s32.totalorder %s81, %s84
    %p90 = scmp.eq.s32.totalorder %s10, 0
    %p91 = por %p89, %p90
    %p92 = scmp.ne.s32.totalorder %s81, %s84
    %p93 = scmp.eq.s32.totalorder %s15, 7
    %p94 = por %p92, %p93
    %p95 = scmp.ne.s32.totalorder %s84, %s85
    %p96 = scmp.eq.s32.totalorder %s15, 0
    %p97 = por %p95, %p96
    %p98 = scmp.ne.s32.totalorder %s84, %s85
    %p99 = scmp.eq.s32.totalorder %s16, 7
    %p100 = por %p98, %p99
    %p102 = scmp.ne.s32.totalorder %s85, %s101
    %p103 = scmp.eq.s32.totalorder %s16, 0
    %p104 = por %p102, %p103
    %s105 = sadd.s32 %s19, 1
    %s106 = smul.u32 %s105, 4
    %p107 = scmp.lt.s32.totalorder %s106, 15
    %s108 = scalar_select %p107, %s106, 15
    %s109 = sadd.s32 %s28, 1
    %s110 = smul.u32 %s109, 4
    %p111 = scmp.lt.s32.totalorder %s110, 15
    %s112 = scalar_select %p111, %s110, 15
    %s113 = ssub.s32 %s17, %s36
    %s114 = ssub.s32 %s108, %s112
    %s115 = sor.u32 %s113, %s114
    %s116 = ssub.s32 %s18, %s32
    %s117 = sor.u32 %s115, %s116
    %p118 = scmp.eq.s32.totalorder %s117, 0
    %s120 = sadd.s32 %s119, 1
    %s121 = scalar_select %p118, %s119, %s120
    %p124 = pneg %p118
    %p125 = scmp.eq.s32.totalorder %s10, 7
    %p126 = por %p124, %p125
    %p127 = scmp.ne.s32.totalorder %s119, %s122
    %p128 = scmp.eq.s32.totalorder %s10, 0
    %p129 = por %p127, %p128
    %p130 = scmp.ne.s32.totalorder %s119, %s122
    %p131 = scmp.eq.s32.totalorder %s15, 7
    %p132 = por %p130, %p131
    %p133 = scmp.ne.s32.totalorder %s122, %s123
    %p134 = scmp.eq.s32.totalorder %s15, 0
    %p135 = por %p133, %p134
    %p136 = scmp.ne.s32.totalorder %s122, %s123
    %p137 = scmp.eq.s32.totalorder %s16, 7
    %p138 = por %p136, %p137
    %p140 = scmp.ne.s32.totalorder %s123, %s139
    %p141 = scmp.eq.s32.totalorder %s16, 0
    %p142 = por %p140, %p141
    %s143 = ssub.s32 %s18, %s32
    %p144 = scmp.eq.s32.totalorder %s143, 0
    %s146 = sadd.s32 %s145, 1
    %s147 = scalar_select %p144, %s145, %s146
    %p150 = pneg %p144
    %p151 = scmp.eq.s32.totalorder %s10, 7
    %p152 = por %p150, %p151
    %p153 = scmp.ne.s32.totalorder %s145, %s148
    %p154 = scmp.eq.s32.totalorder %s10, 0
    %p155 = por %p153, %p154
    %p156 = scmp.ne.s32.totalorder %s145, %s148
    %p157 = scmp.eq.s32.totalorder %s15, 7
    %p158 = por %p156, %p157
    %p159 = scmp.ne.s32.totalorder %s148, %s149
    %p160 = scmp.eq.s32.totalorder %s15, 0
    %p161 = por %p159, %p160
    %p162 = scmp.ne.s32.totalorder %s148, %s149
    %p163 = scmp.eq.s32.totalorder %s16, 7
    %p164 = por %p162, %p163
    %p166 = scmp.ne.s32.totalorder %s149, %s165
    %p167 = scmp.eq.s32.totalorder %s16, 0
    %p168 = por %p166, %p167
    %s169 = ssub.s32 %s17, %s36
    %s170 = ssub.s32 %s19, %s28
    %s171 = sor.u32 %s169, %s170
    %s172 = ssub.s32 %s18, %s32
    %s173 = sor.u32 %s171, %s172
    %p174 = scmp.eq.s32.totalorder %s173, 0
    %s176 = sadd.s32 %s175, 1
    %s177 = scalar_select %p174, %s175, %s176
    %p180 = pneg %p174
    %p181 = scmp.eq.s32.totalorder %s10, 7
    %p182 = por %p180, %p181
    %p183 = scmp.ne.s32.totalorder %s175, %s178
    %p184 = scmp.eq.s32.totalorder %s10, 0
    %p185 = por %p183, %p184
    %p186 = scmp.ne.s32.totalorder %s175, %s178
    %p187 = scmp.eq.s32.totalorder %s15, 7
    %p188 = por %p186, %p187
    %p189 = scmp.ne.s32.totalorder %s178, %s179
    %p190 = scmp.eq.s32.totalorder %s15, 0
    %p191 = por %p189, %p190
    %p192 = scmp.ne.s32.totalorder %s178, %s179
    %p193 = scmp.eq.s32.totalorder %s16, 7
    %p194 = por %p192, %p193
    %p196 = scmp.ne.s32.totalorder %s179, %s195
    %p197 = scmp.eq.s32.totalorder %s16, 0
    %p198 = por %p196, %p197
    %p199 = scmp.le.s32.totalorder 1, %s10
    %p200 = scmp.lt.s32.totalorder %s10, 9
    %p201 = pnand %p199, %p200
    %p202 = pneg %p201
    // Predicated region
    $region9: #{tpu_custom_call.1} parent=5 // pred_check
      _
    $region10: #{tpu_custom_call.1} parent=5 // pred_check_branch
      %204 = sbr.rel (%p201) target = $region12
    $region11: #{tpu_custom_call.1} parent=5 // pred_region
      %s205 = ssub.s32 %s10, 1
      // Predicated region
      $region13: #{tpu_custom_call.1} parent=11 // pred_check
        %p206 = pneg %p161
      $region14: #{tpu_custom_call.1} parent=11 // pred_check_branch
        %208 = sbr.rel (%p206) target = $region16
      $region15: #{tpu_custom_call.1} parent=11 // pred_region
        %p209 = scmp.lt.s32.totalorder %s21, 0
        %s210 = scalar_select %p209, %s21, 0
        %s211 = scalar_lea.vmem %s3, %s210
      $region16: #{tpu_custom_call.1} parent=11 // pred_fallthru
        _
    $region12: #{tpu_custom_call.1} parent=5 // pred_fallthru
      _
    %p212 = scmp.lt.s32.totalorder %s10, 8
    // Predicated region
    $region17: #{tpu_custom_call.1} parent=5 // pred_check
      %p213 = pneg %p212
    $region18: #{tpu_custom_call.1} parent=5 // pred_check_branch
      %215 = sbr.rel (%p213) target = $region20
    $region19: #{tpu_custom_call.1} parent=5 // pred_region
      // Predicated region
      $region21: #{tpu_custom_call.1} parent=19 // pred_check
        %p216 = pneg %p53
      $region22: #{tpu_custom_call.1} parent=19 // pred_check_branch
        %218 = sbr.rel (%p216) target = $region24
      $region23: #{tpu_custom_call.1} parent=19 // pred_region
        %s219 = smul.u32 8, %s19
        %p220 = scmp.lt.s32.totalorder %s17, 1
        %s221 = scalar_select %p220, %s17, 1
        %p222 = scmp.lt.s32.totalorder %s219, 31
        %s223 = scalar_select %p222, %s219, 31
        %p224 = scmp.lt.s32.totalorder %s18, 0
        %s225 = scalar_select %p224, %s18, 0
        %s226 = sadd.s32 %s225, %s223
        %s227 = smul.addr %s221, 32
        %s228 = sadd.s32 %s226, %s227
        %s229 = smul.addr %s228, 8
        %s230 = scalar_lea.vmem %s0, %s229
        %s231 = smul.u32 8, %s19
      $region24: #{tpu_custom_call.1} parent=19 // pred_fallthru
        _
      // Predicated region
      $region25: #{tpu_custom_call.1} parent=19 // pred_check
        %p232 = pneg %p91
      $region26: #{tpu_custom_call.1} parent=19 // pred_check_branch
        %234 = sbr.rel (%p232) target = $region28
      $region27: #{tpu_custom_call.1} parent=19 // pred_region
        %s235 = smul.u32 %s19, 4
        %s236 = ssub.s32 %s235, 1
        %p237 = scmp.gt.s32.totalorder %s236, 0
        %s238 = scalar_select %p237, %s236, 0
        %s239 = smul.u32 2, %s238
        %p240 = scmp.lt.s32.totalorder %s17, 1
        %s241 = scalar_select %p240, %s17, 1
        %p242 = scmp.lt.s32.totalorder %s239, 31
        %s243 = scalar_select %p242, %s239, 31
        %p244 = scmp.lt.s32.totalorder %s18, 0
        %s245 = scalar_select %p244, %s18, 0
        %s246 = sadd.s32 %s245, %s243
        %s247 = smul.addr %s241, 32
        %s248 = sadd.s32 %s246, %s247
        %s249 = smul.addr %s248, 8
        %s250 = scalar_lea.vmem %s1, %s249
        %s251 = smul.u32 %s19, 4
        %s252 = ssub.s32 %s251, 1
        %p253 = scmp.gt.s32.totalorder %s252, 0
        %s254 = scalar_select %p253, %s252, 0
        %s255 = smul.u32 2, %s254
      $region28: #{tpu_custom_call.1} parent=19 // pred_fallthru
        _
      // Predicated region
      $region29: #{tpu_custom_call.1} parent=19 // pred_check
        %p256 = pneg %p129
      $region30: #{tpu_custom_call.1} parent=19 // pred_check_branch
        %258 = sbr.rel (%p256) target = $region32
      $region31: #{tpu_custom_call.1} parent=19 // pred_region
        %s259 = sadd.s32 %s19, 1
        %s260 = smul.u32 %s259, 4
        %p261 = scmp.lt.s32.totalorder %s260, 15
        %s262 = scalar_select %p261, %s260, 15
        %s263 = smul.u32 2, %s262
        %p264 = scmp.lt.s32.totalorder %s17, 1
        %s265 = scalar_select %p264, %s17, 1
        %p266 = scmp.lt.s32.totalorder %s263, 31
        %s267 = scalar_select %p266, %s263, 31
        %p268 = scmp.lt.s32.totalorder %s18, 0
        %s269 = scalar_select %p268, %s18, 0
        %s270 = sadd.s32 %s269, %s267
        %s271 = smul.addr %s265, 32
        %s272 = sadd.s32 %s270, %s271
        %s273 = smul.addr %s272, 8
        %s274 = scalar_lea.vmem %s2, %s273
        %s275 = sadd.s32 %s19, 1
        %s276 = smul.u32 %s275, 4
        %p277 = scmp.lt.s32.totalorder %s276, 15
        %s278 = scalar_select %p277, %s276, 15
        %s279 = smul.u32 2, %s278
      $region32: #{tpu_custom_call.1} parent=19 // pred_fallthru
        _
    $region20: #{tpu_custom_call.1} parent=5 // pred_fallthru
      _
    %p280 = scmp.le.s32.totalorder 1, %s10
    %p281 = scmp.lt.s32.totalorder %s10, 9
    %p282 = pnand %p280, %p281
    %p283 = pneg %p282
    // Predicated region
    $region33: #{tpu_custom_call.1} parent=5 // pred_check
      _
    $region34: #{tpu_custom_call.1} parent=5 // pred_check_branch
      %285 = sbr.rel (%p282) target = $region36
    $region35: #{tpu_custom_call.1} parent=5 // pred_region
      %s286 = ssub.s32 %s10, 1
      %s287 = smul.u32 8, %s22
      %p288 = scmp.lt.s32.totalorder %s20, 1
      %s289 = scalar_select %p288, %s20, 1
      %p290 = scmp.lt.s32.totalorder %s287, 31
      %s291 = scalar_select %p290, %s287, 31
      %p292 = scmp.lt.s32.totalorder %s21, 0
      %s293 = scalar_select %p292, %s21, 0
      %s294 = sadd.s32 %s293, %s291
      %s295 = smul.addr %s289, 32
      %s296 = sadd.s32 %s294, %s295
      %s297 = smul.addr %s296, 8
      %s298 = scalar_lea.vmem %s0, %s297
      %p299 = pneg %p59
      %p300 = pneg %p56
      %s301 = smul.u32 %s22, 4
      %s302 = ssub.s32 %s301, 1
      %p303 = scmp.gt.s32.totalorder %s302, 0
      %s304 = scalar_select %p303, %s302, 0
      %s305 = smul.u32 2, %s304
      %p306 = scmp.lt.s32.totalorder %s20, 1
      %s307 = scalar_select %p306, %s20, 1
      %p308 = scmp.lt.s32.totalorder %s305, 31
      %s309 = scalar_select %p308, %s305, 31
      %p310 = scmp.lt.s32.totalorder %s21, 0
      %s311 = scalar_select %p310, %s21, 0
      %s312 = sadd.s32 %s311, %s309
      %s313 = smul.addr %s307, 32
      %s314 = sadd.s32 %s312, %s313
      %s315 = smul.addr %s314, 8
      %s316 = scalar_lea.vmem %s1, %s315
      %p317 = pneg %p97
      %p318 = pneg %p94
      %s319 = sadd.s32 %s22, 1
      %s320 = smul.u32 %s319, 4
      %p321 = scmp.lt.s32.totalorder %s320, 15
      %s322 = scalar_select %p321, %s320, 15
      %s323 = smul.u32 2, %s322
      %p324 = scmp.lt.s32.totalorder %s20, 1
      %s325 = scalar_select %p324, %s20, 1
      %p326 = scmp.lt.s32.totalorder %s323, 31
      %s327 = scalar_select %p326, %s323, 31
      %p328 = scmp.lt.s32.totalorder %s21, 0
      %s329 = scalar_select %p328, %s21, 0
      %s330 = sadd.s32 %s329, %s327
      %s331 = smul.addr %s325, 32
      %s332 = sadd.s32 %s330, %s331
      %s333 = smul.addr %s332, 8
      %s334 = scalar_lea.vmem %s2, %s333
      %p335 = pneg %p135
      %p336 = pneg %p132
      %p337 = scmp.lt.s32.totalorder %s21, 0
      %s338 = scalar_select %p337, %s21, 0
      %s339 = scalar_lea.vmem %s3, %s338
      %p340 = pneg %p161
      %p341 = pneg %p158
      %p342 = pneg %p191
      %p343 = pneg %p188
      %s344 = smul.u32 8, %s22
      %p345 = scmp.lt.s32.totalorder %s20, 1
      %s346 = scalar_select %p345, %s20, 1
      %p347 = scmp.lt.s32.totalorder %s344, 31
      %s348 = scalar_select %p347, %s344, 31
      %p349 = scmp.lt.s32.totalorder %s21, 0
      %s350 = scalar_select %p349, %s21, 0
      %s351 = sadd.s32 %s350, %s348
      %s352 = smul.addr %s346, 32
      %s353 = sadd.s32 %s351, %s352
      %s354 = smul.addr %s353, 8
      %s355 = scalar_lea.vmem %s4, %s354
      %s356 = smul.u32 8, %s22
      %p357 = scmp.lt.s32.totalorder %s20, 1
      %s358 = scalar_select %p357, %s20, 1
      %p359 = scmp.lt.s32.totalorder %s356, 31
      %s360 = scalar_select %p359, %s356, 31
      %p361 = scmp.lt.s32.totalorder %s21, 0
      %s362 = scalar_select %p361, %s21, 0
      %s363 = sadd.s32 %s362, %s360
      %s364 = smul.addr %s358, 32
      %s365 = sadd.s32 %s363, %s364
      %s366 = smul.addr %s365, 8
      %s367 = scalar_lea.vmem %s0, %s366
      %s368 = smul.u32 8, %s22
      %s369 = smul.u32 %s22, 4
      %s370 = ssub.s32 %s369, 1
      %p371 = scmp.gt.s32.totalorder %s370, 0
      %s372 = scalar_select %p371, %s370, 0
      %s373 = smul.u32 2, %s372
      %p374 = scmp.lt.s32.totalorder %s20, 1
      %s375 = scalar_select %p374, %s20, 1
      %p376 = scmp.lt.s32.totalorder %s373, 31
      %s377 = scalar_select %p376, %s373, 31
      %p378 = scmp.lt.s32.totalorder %s21, 0
      %s379 = scalar_select %p378, %s21, 0
      %s380 = sadd.s32 %s379, %s377
      %s381 = smul.addr %s375, 32
      %s382 = sadd.s32 %s380, %s381
      %s383 = smul.addr %s382, 8
      %s384 = scalar_lea.vmem %s1, %s383
      %s385 = smul.u32 %s22, 4
      %s386 = ssub.s32 %s385, 1
      %p387 = scmp.gt.s32.totalorder %s386, 0
      %s388 = scalar_select %p387, %s386, 0
      %s389 = smul.u32 2, %s388
      %s390 = sadd.s32 %s22, 1
      %s391 = smul.u32 %s390, 4
      %p392 = scmp.lt.s32.totalorder %s391, 15
      %s393 = scalar_select %p392, %s391, 15
      %s394 = smul.u32 2, %s393
      %p395 = scmp.lt.s32.totalorder %s20, 1
      %s396 = scalar_select %p395, %s20, 1
      %p397 = scmp.lt.s32.totalorder %s394, 31
      %s398 = scalar_select %p397, %s394, 31
      %p399 = scmp.lt.s32.totalorder %s21, 0
      %s400 = scalar_select %p399, %s21, 0
      %s401 = sadd.s32 %s400, %s398
      %s402 = smul.addr %s396, 32
      %s403 = sadd.s32 %s401, %s402
      %s404 = smul.addr %s403, 8
      %s405 = scalar_lea.vmem %s2, %s404
      %s406 = sadd.s32 %s22, 1
      %s407 = smul.u32 %s406, 4
      %p408 = scmp.lt.s32.totalorder %s407, 15
      %s409 = scalar_select %p408, %s407, 15
      %s410 = smul.u32 2, %s409
      %p411 = scmp.lt.s32.totalorder %s21, 0
      %s412 = scalar_select %p411, %s21, 0
      %s413 = scalar_lea.vmem %s3, %s412
      %s414 = smul.u32 8, %s22
      %p415 = scmp.lt.s32.totalorder %s20, 1
      %s416 = scalar_select %p415, %s20, 1
      %p417 = scmp.lt.s32.totalorder %s414, 31
      %s418 = scalar_select %p417, %s414, 31
      %p419 = scmp.lt.s32.totalorder %s21, 0
      %s420 = scalar_select %p419, %s21, 0
      %s421 = sadd.s32 %s420, %s418
      %s422 = smul.addr %s416, 32
      %s423 = sadd.s32 %s421, %s422
      %s424 = smul.addr %s423, 8
      %s425 = scalar_lea.vmem %s4, %s424
      %s426 = smul.u32 8, %s22
      %v427 = vld [vmem:[%s367] sm:$0xff]
      %v428 = vld [vmem:[%s367 + $0x8] sm:$0xff]
      %v429 = vld [vmem:[%s367 + $0x10] sm:$0xff]
      %v430 = vld [vmem:[%s367 + $0x18] sm:$0xff]
      %v431 = vld [vmem:[%s367 + $0x20] sm:$0xff]
      %v432 = vld [vmem:[%s367 + $0x28] sm:$0xff]
      %v433 = vld [vmem:[%s367 + $0x30] sm:$0xff]
      %v434 = vld [vmem:[%s367 + $0x38] sm:$0xff]
      %v435 = vlaneseq
      %v436 = vshrl.u32 %v435, 7
      %v437 = vadd.s32 %v436, 8
      %v438 = vadd.s32 %v436, 16
      %v439 = vadd.s32 %v436, 24
      %v440 = vadd.s32 %v436, 32
      %v441 = vadd.s32 %v436, 40
      %v442 = vadd.s32 %v436, 48
      %v443 = vadd.s32 %v436, 56
      %vm444 = vcmp.lt.s32.totalorder %v436, 0
      %v445 = vsub.s32 0, %v436
      %v446 = vsel %vm444, %v445, %v436
      %v447 = vshrl.u32 %v446, 4
      %v448 = vand.u32 %v446, 15
      %v449 = vsub.s32 0, %v448
      %v450 = vsel %vm444, %v449, %v448
      %vm451 = vcmp.lt.s32.totalorder %v437, 0
      %v452 = vsub.s32 0, %v437
      %v453 = vsel %vm451, %v452, %v437
      %v454 = vshrl.u32 %v453, 4
      %v455 = vand.u32 %v453, 15
      %v456 = vsub.s32 0, %v455
      %v457 = vsel %vm451, %v456, %v455
      %vm458 = vcmp.lt.s32.totalorder %v438, 0
      %v459 = vsub.s32 0, %v438
      %v460 = vsel %vm458, %v459, %v438
      %v461 = vshrl.u32 %v460, 4
      %v462 = vand.u32 %v460, 15
      %v463 = vsub.s32 0, %v462
      %v464 = vsel %vm458, %v463, %v462
      %vm465 = vcmp.lt.s32.totalorder %v439, 0
      %v466 = vsub.s32 0, %v439
      %v467 = vsel %vm465, %v466, %v439
      %v468 = vshrl.u32 %v467, 4
      %v469 = vand.u32 %v467, 15
      %v470 = vsub.s32 0, %v469
      %v471 = vsel %vm465, %v470, %v469
      %vm472 = vcmp.lt.s32.totalorder %v440, 0
      %v473 = vsub.s32 0, %v440
      %v474 = vsel %vm472, %v473, %v440
      %v475 = vshrl.u32 %v474, 4
      %v476 = vand.u32 %v474, 15
      %v477 = vsub.s32 0, %v476
      %v478 = vsel %vm472, %v477, %v476
      %vm479 = vcmp.lt.s32.totalorder %v441, 0
      %v480 = vsub.s32 0, %v441
      %v481 = vsel %vm479, %v480, %v441
      %v482 = vshrl.u32 %v481, 4
      %v483 = vand.u32 %v481, 15
      %v484 = vsub.s32 0, %v483
      %v485 = vsel %vm479, %v484, %v483
      %vm486 = vcmp.lt.s32.totalorder %v442, 0
      %v487 = vsub.s32 0, %v442
      %v488 = vsel %vm486, %v487, %v442
      %v489 = vshrl.u32 %v488, 4
      %v490 = vand.u32 %v488, 15
      %v491 = vsub.s32 0, %v490
      %v492 = vsel %vm486, %v491, %v490
      %vm493 = vcmp.lt.s32.totalorder %v443, 0
      %v494 = vsub.s32 0, %v443
      %v495 = vsel %vm493, %v494, %v443
      %v496 = vshrl.u32 %v495, 4
      %v497 = vand.u32 %v495, 15
      %v498 = vsub.s32 0, %v497
      %v499 = vsel %vm493, %v498, %v497
      %vm500 = vcmp.ne.s32.totalorder %v450, 0
      %vm501 = vcmp.ne.s32.totalorder %v457, 0
      %vm502 = vcmp.ne.s32.totalorder %v464, 0
      %vm503 = vcmp.ne.s32.totalorder %v471, 0
      %vm504 = vcmp.ne.s32.totalorder %v478, 0
      %vm505 = vcmp.ne.s32.totalorder %v485, 0
      %vm506 = vcmp.ne.s32.totalorder %v492, 0
      %vm507 = vcmp.ne.s32.totalorder %v499, 0
      %vm508 = vcmp.lt.s32.totalorder %v450, 0
      %vm509 = vcmp.lt.s32.totalorder %v457, 0
      %vm510 = vcmp.lt.s32.totalorder %v464, 0
      %vm511 = vcmp.lt.s32.totalorder %v471, 0
      %vm512 = vcmp.lt.s32.totalorder %v478, 0
      %vm513 = vcmp.lt.s32.totalorder %v485, 0
      %vm514 = vcmp.lt.s32.totalorder %v492, 0
      %vm515 = vcmp.lt.s32.totalorder %v499, 0
      %vm516 = vmand %vm508, %vm500
      %vm517 = vmand %vm509, %vm501
      %vm518 = vmand %vm510, %vm502
      %vm519 = vmand %vm511, %vm503
      %vm520 = vmand %vm512, %vm504
      %vm521 = vmand %vm513, %vm505
      %vm522 = vmand %vm514, %vm506
      %vm523 = vmand %vm515, %vm507
      %v524 = vadd.s32 %v450, 16
      %v525 = vadd.s32 %v457, 16
      %v526 = vadd.s32 %v464, 16
      %v527 = vadd.s32 %v471, 16
      %v528 = vadd.s32 %v478, 16
      %v529 = vadd.s32 %v485, 16
      %v530 = vadd.s32 %v492, 16
      %v531 = vadd.s32 %v499, 16
      %v532 = vsel %vm516, %v524, %v450
      %v533 = vsel %vm517, %v525, %v457
      %v534 = vsel %vm518, %v526, %v464
      %v535 = vsel %vm519, %v527, %v471
      %v536 = vsel %vm520, %v528, %v478
      %v537 = vsel %vm521, %v529, %v485
      %v538 = vsel %vm522, %v530, %v492
      %v539 = vsel %vm523, %v531, %v499
      %s540 = scalar_lea.vmem %s413, 3
      %v541 = vld [vmem:[%s540] sm:$0x1]
      %s542 = scalar_lea.vmem %s413, 4
      %v543 = vld [vmem:[%s542] sm:$0x1]
      %s544 = scalar_lea.vmem %s413, 5
      %v545 = vld [vmem:[%s544] sm:$0x1]
      %vm546 = vcmp.gt.s32.totalorder %v532, 0
      %vm547 = vcmp.gt.s32.totalorder %v533, 0
      %vm548 = vcmp.gt.s32.totalorder %v534, 0
      %vm549 = vcmp.gt.s32.totalorder %v535, 0
      %vm550 = vcmp.gt.s32.totalorder %v536, 0
      %vm551 = vcmp.gt.s32.totalorder %v537, 0
      %vm552 = vcmp.gt.s32.totalorder %v538, 0
      %vm553 = vcmp.gt.s32.totalorder %v539, 0
      %v554 = vrot.slane %v427, 7
      %v555 = vrot.slane %v428, 7
      %v556 = vrot.slane %v429, 7
      %v557 = vrot.slane %v430, 7
      %v558 = vrot.slane %v431, 7
      %v559 = vrot.slane %v432, 7
      %v560 = vrot.slane %v433, 7
      %v561 = vrot.slane %v434, 7
      %vm562 = vcmp.lt.s32.totalorder %v436, 1
      %v563 = vsel %vm562, %v560, %v561
      %v564 = vsel %vm562, %v559, %v560
      %v565 = vsel %vm562, %v558, %v559
      %v566 = vsel %vm562, %v557, %v558
      %v567 = vsel %vm562, %v556, %v557
      %v568 = vsel %vm562, %v555, %v556
      %v569 = vsel %vm562, %v554, %v555
      %v570 = vsel %vm562, %v561, %v554
      %v571 = vsel %vm546, %v570, 0.0
      %v572 = vsel %vm547, %v569, 0.0
      %v573 = vsel %vm548, %v568, 0.0
      %v574 = vsel %vm549, %v567, 0.0
      %v575 = vsel %vm550, %v566, 0.0
      %v576 = vsel %vm551, %v565, 0.0
      %v577 = vsel %vm552, %v564, 0.0
      %v578 = vsel %vm553, %v563, 0.0
      %vm579 = vcmp.lt.s32.totalorder %v532, 15
      %vm580 = vcmp.lt.s32.totalorder %v533, 15
      %vm581 = vcmp.lt.s32.totalorder %v534, 15
      %vm582 = vcmp.lt.s32.totalorder %v535, 15
      %vm583 = vcmp.lt.s32.totalorder %v536, 15
      %vm584 = vcmp.lt.s32.totalorder %v537, 15
      %vm585 = vcmp.lt.s32.totalorder %v538, 15
      %vm586 = vcmp.lt.s32.totalorder %v539, 15
      %v587 = vrot.slane %v427, 1
      %v588 = vrot.slane %v428, 1
      %v589 = vrot.slane %v429, 1
      %v590 = vrot.slane %v430, 1
      %v591 = vrot.slane %v431, 1
      %v592 = vrot.slane %v432, 1
      %v593 = vrot.slane %v433, 1
      %v594 = vrot.slane %v434, 1
      %vm595 = vcmp.lt.s32.totalorder %v436, 7
      %v596 = vsel %vm595, %v593, %v594
      %v597 = vsel %vm595, %v592, %v593
      %v598 = vsel %vm595, %v591, %v592
      %v599 = vsel %vm595, %v590, %v591
      %v600 = vsel %vm595, %v589, %v590
      %v601 = vsel %vm595, %v588, %v589
      %v602 = vsel %vm595, %v587, %v588
      %v603 = vsel %vm595, %v594, %v587
      %v604 = vsel %vm579, %v602, 0.0
      %v605 = vsel %vm580, %v601, 0.0
      %v606 = vsel %vm581, %v600, 0.0
      %v607 = vsel %vm582, %v599, 0.0
      %v608 = vsel %vm583, %v598, 0.0
      %v609 = vsel %vm584, %v597, 0.0
      %v610 = vsel %vm585, %v596, 0.0
      %v611 = vsel %vm586, %v603, 0.0
      %v613 = vlaneseq
      %v614 = vshrl.u32 %v613, 7
      %v615 = vsub.s32 0, %v614
      %v616 = vrot.slane %v541, %v615
      %v618 = vmul.f32 %v571, %v616
      %v619 = vmul.f32 %v572, %v616
      %v620 = vmul.f32 %v573, %v616
      %v621 = vmul.f32 %v574, %v616
      %v622 = vmul.f32 %v575, %v616
      %v623 = vmul.f32 %v576, %v616
      %v624 = vmul.f32 %v577, %v616
      %v625 = vmul.f32 %v578, %v616
      %v627 = vlaneseq
      %v628 = vshrl.u32 %v627, 7
      %v629 = vsub.s32 0, %v628
      %v630 = vrot.slane %v543, %v629
      %v632 = vmul.f32 %v427, %v630
      %v633 = vmul.f32 %v428, %v630
      %v634 = vmul.f32 %v429, %v630
      %v635 = vmul.f32 %v430, %v630
      %v636 = vmul.f32 %v431, %v630
      %v637 = vmul.f32 %v432, %v630
      %v638 = vmul.f32 %v433, %v630
      %v639 = vmul.f32 %v434, %v630
      %v640 = vadd.f32 %v618, %v632
      %v641 = vadd.f32 %v619, %v633
      %v642 = vadd.f32 %v620, %v634
      %v643 = vadd.f32 %v621, %v635
      %v644 = vadd.f32 %v622, %v636
      %v645 = vadd.f32 %v623, %v637
      %v646 = vadd.f32 %v624, %v638
      %v647 = vadd.f32 %v625, %v639
      %v649 = vlaneseq
      %v650 = vshrl.u32 %v649, 7
      %v651 = vsub.s32 0, %v650
      %v652 = vrot.slane %v545, %v651
      %v654 = vmul.f32 %v604, %v652
      %v655 = vmul.f32 %v605, %v652
      %v656 = vmul.f32 %v606, %v652
      %v657 = vmul.f32 %v607, %v652
      %v658 = vmul.f32 %v608, %v652
      %v659 = vmul.f32 %v609, %v652
      %v660 = vmul.f32 %v610, %v652
      %v661 = vmul.f32 %v611, %v652
      %v662 = vadd.f32 %v640, %v654
      %v663 = vadd.f32 %v641, %v655
      %v664 = vadd.f32 %v642, %v656
      %v665 = vadd.f32 %v643, %v657
      %v666 = vadd.f32 %v644, %v658
      %v667 = vadd.f32 %v645, %v659
      %v668 = vadd.f32 %v646, %v660
      %v669 = vadd.f32 %v647, %v661
      %s670 = scalar_lea.vmem %s413, 9
      %v671 = vld [vmem:[%s670] sm:$0x1]
      %v673 = vlaneseq
      %v674 = vshrl.u32 %v673, 7
      %v675 = vsub.s32 0, %v674
      %v676 = vrot.slane %v671, %v675
      %v678 = vadd.f32 %v662, %v676
      %v679 = vadd.f32 %v663, %v676
      %v680 = vadd.f32 %v664, %v676
      %v681 = vadd.f32 %v665, %v676
      %v682 = vadd.f32 %v666, %v676
      %v683 = vadd.f32 %v667, %v676
      %v684 = vadd.f32 %v668, %v676
      %v685 = vadd.f32 %v669, %v676
      %vm686 = vcmask 261120
      %687 = vst.msk [vmem:[#allocation2] sm:$0xff] %vm686, %v678
      %688 = vst.msk [vmem:[#allocation2 + $0x8] sm:$0xff] %vm686, %v679
      %689 = vst.msk [vmem:[#allocation2 + $0x10] sm:$0xff] %vm686, %v680
      %690 = vst.msk [vmem:[#allocation2 + $0x18] sm:$0xff] %vm686, %v681
      %691 = vst.msk [vmem:[#allocation2 + $0x20] sm:$0xff] %vm686, %v682
      %692 = vst.msk [vmem:[#allocation2 + $0x28] sm:$0xff] %vm686, %v683
      %693 = vst.msk [vmem:[#allocation2 + $0x30] sm:$0xff] %vm686, %v684
      %694 = vst.msk [vmem:[#allocation2 + $0x38] sm:$0xff] %vm686, %v685
      %v695 = vld [vmem:[%s413] sm:$0x1]
      %s696 = scalar_lea.vmem %s413, 1
      %v697 = vld [vmem:[%s696] sm:$0x1]
      %s698 = scalar_lea.vmem %s413, 2
      %v699 = vld [vmem:[%s698] sm:$0x1]
      %v701 = vlaneseq
      %v702 = vshrl.u32 %v701, 7
      %v703 = vsub.s32 0, %v702
      %v704 = vrot.slane %v695, %v703
      %v706 = vmul.f32 %v571, %v704
      %v707 = vmul.f32 %v572, %v704
      %v708 = vmul.f32 %v573, %v704
      %v709 = vmul.f32 %v574, %v704
      %v710 = vmul.f32 %v575, %v704
      %v711 = vmul.f32 %v576, %v704
      %v713 = vlaneseq
      %v714 = vshrl.u32 %v713, 7
      %v715 = vsub.s32 0, %v714
      %v716 = vrot.slane %v697, %v715
      %v718 = vmul.f32 %v427, %v716
      %v719 = vmul.f32 %v428, %v716
      %v720 = vmul.f32 %v429, %v716
      %v721 = vmul.f32 %v430, %v716
      %v722 = vmul.f32 %v431, %v716
      %v723 = vmul.f32 %v432, %v716
      %v724 = vadd.f32 %v706, %v718
      %v725 = vadd.f32 %v707, %v719
      %v726 = vadd.f32 %v708, %v720
      %v727 = vadd.f32 %v709, %v721
      %v728 = vadd.f32 %v710, %v722
      %v729 = vadd.f32 %v711, %v723
      %v731 = vlaneseq
      %v732 = vshrl.u32 %v731, 7
      %v733 = vsub.s32 0, %v732
      %v734 = vrot.slane %v699, %v733
      %v736 = vmul.f32 %v604, %v734
      %v737 = vmul.f32 %v605, %v734
      %v738 = vmul.f32 %v606, %v734
      %v739 = vmul.f32 %v607, %v734
      %v740 = vmul.f32 %v608, %v734
      %v741 = vmul.f32 %v609, %v734
      %v742 = vadd.f32 %v724, %v736
      %v743 = vadd.f32 %v725, %v737
      %v744 = vadd.f32 %v726, %v738
      %v745 = vadd.f32 %v727, %v739
      %v746 = vadd.f32 %v728, %v740
      %v747 = vadd.f32 %v729, %v741
      %v748 = vld [vmem:[#allocation2 + $0x10] sm:$0xff]
      %v749 = vld [vmem:[#allocation2 + $0x18] sm:$0xff]
      %v750 = vld [vmem:[#allocation2 + $0x20] sm:$0xff]
      %v751 = vld [vmem:[#allocation2 + $0x28] sm:$0xff]
      %v752 = vld [vmem:[#allocation2 + $0x30] sm:$0xff]
      %v753 = vld [vmem:[#allocation2 + $0x38] sm:$0xff]
      %v754 = vadd.f32 %v748, %v742
      %v755 = vadd.f32 %v749, %v743
      %v756 = vadd.f32 %v750, %v744
      %v757 = vadd.f32 %v751, %v745
      %v758 = vadd.f32 %v752, %v746
      %v759 = vadd.f32 %v753, %v747
      %760 = vst.msk [vmem:[#allocation2 + $0x10] sm:$0xff] %vm686, %v754
      %761 = vst.msk [vmem:[#allocation2 + $0x18] sm:$0xff] %vm686, %v755
      %762 = vst.msk [vmem:[#allocation2 + $0x20] sm:$0xff] %vm686, %v756
      %763 = vst.msk [vmem:[#allocation2 + $0x28] sm:$0xff] %vm686, %v757
      %764 = vst.msk [vmem:[#allocation2 + $0x30] sm:$0xff] %vm686, %v758
      %765 = vst.msk [vmem:[#allocation2 + $0x38] sm:$0xff] %vm686, %v759
      %s766 = scalar_lea.vmem %s413, 6
      %v767 = vld [vmem:[%s766] sm:$0x1]
      %s768 = scalar_lea.vmem %s413, 7
      %v769 = vld [vmem:[%s768] sm:$0x1]
      %s770 = scalar_lea.vmem %s413, 8
      %v771 = vld [vmem:[%s770] sm:$0x1]
      %v773 = vlaneseq
      %v774 = vshrl.u32 %v773, 7
      %v775 = vsub.s32 0, %v774
      %v776 = vrot.slane %v767, %v775
      %v778 = vmul.f32 %v573, %v776
      %v779 = vmul.f32 %v574, %v776
      %v780 = vmul.f32 %v575, %v776
      %v781 = vmul.f32 %v576, %v776
      %v782 = vmul.f32 %v577, %v776
      %v783 = vmul.f32 %v578, %v776
      %v785 = vlaneseq
      %v786 = vshrl.u32 %v785, 7
      %v787 = vsub.s32 0, %v786
      %v788 = vrot.slane %v769, %v787
      %v790 = vmul.f32 %v429, %v788
      %v791 = vmul.f32 %v430, %v788
      %v792 = vmul.f32 %v431, %v788
      %v793 = vmul.f32 %v432, %v788
      %v794 = vmul.f32 %v433, %v788
      %v795 = vmul.f32 %v434, %v788
      %v796 = vadd.f32 %v778, %v790
      %v797 = vadd.f32 %v779, %v791
      %v798 = vadd.f32 %v780, %v792
      %v799 = vadd.f32 %v781, %v793
      %v800 = vadd.f32 %v782, %v794
      %v801 = vadd.f32 %v783, %v795
      %v803 = vlaneseq
      %v804 = vshrl.u32 %v803, 7
      %v805 = vsub.s32 0, %v804
      %v806 = vrot.slane %v771, %v805
      %v808 = vmul.f32 %v606, %v806
      %v809 = vmul.f32 %v607, %v806
      %v810 = vmul.f32 %v608, %v806
      %v811 = vmul.f32 %v609, %v806
      %v812 = vmul.f32 %v610, %v806
      %v813 = vmul.f32 %v611, %v806
      %v814 = vadd.f32 %v796, %v808
      %v815 = vadd.f32 %v797, %v809
      %v816 = vadd.f32 %v798, %v810
      %v817 = vadd.f32 %v799, %v811
      %v818 = vadd.f32 %v800, %v812
      %v819 = vadd.f32 %v801, %v813
      %v820 = vld [vmem:[#allocation2] sm:$0xff]
      %v821 = vld [vmem:[#allocation2 + $0x8] sm:$0xff]
      %v822 = vld [vmem:[#allocation2 + $0x10] sm:$0xff]
      %v823 = vld [vmem:[#allocation2 + $0x18] sm:$0xff]
      %v824 = vld [vmem:[#allocation2 + $0x20] sm:$0xff]
      %v825 = vld [vmem:[#allocation2 + $0x28] sm:$0xff]
      %v826 = vadd.f32 %v820, %v814
      %v827 = vadd.f32 %v821, %v815
      %v828 = vadd.f32 %v822, %v816
      %v829 = vadd.f32 %v823, %v817
      %v830 = vadd.f32 %v824, %v818
      %v831 = vadd.f32 %v825, %v819
      %832 = vst.msk [vmem:[#allocation2] sm:$0xff] %vm686, %v826
      %833 = vst.msk [vmem:[#allocation2 + $0x8] sm:$0xff] %vm686, %v827
      %834 = vst.msk [vmem:[#allocation2 + $0x10] sm:$0xff] %vm686, %v828
      %835 = vst.msk [vmem:[#allocation2 + $0x18] sm:$0xff] %vm686, %v829
      %836 = vst.msk [vmem:[#allocation2 + $0x20] sm:$0xff] %vm686, %v830
      %837 = vst.msk [vmem:[#allocation2 + $0x28] sm:$0xff] %vm686, %v831
      %p838 = scmp.gt.s32.totalorder %s22, 0
      // Predicated region
      $region37: #{tpu_custom_call.1} parent=35 // pred_check
        %p839 = pneg %p838
      $region38: #{tpu_custom_call.1} parent=35 // pred_check_branch
        %841 = sbr.rel (%p839) target = $region40
      $region39: #{tpu_custom_call.1} parent=35 // pred_region
        %v842 = vld [vmem:[%s384] sm:$0xff]
        %v843 = vld [vmem:[%s384 + $0x8] sm:$0xff]
        %v844 = vld [vmem:[%s413] sm:$0x1]
        %v845 = vld [vmem:[%s696] sm:$0x1]
        %v846 = vld [vmem:[%s698] sm:$0x1]
        %vm847 = vcmp.gt.s32.totalorder %v436, 0
        %vm848 = vcmp.gt.s32.totalorder %v437, 0
        %v849 = vrot.slane %v842, 7
        %v850 = vrot.slane %v843, 7
        %v851 = vsel %vm562, %v849, %v850
        %v852 = vsel %vm562, %v850, %v849
        %v853 = vsel %vm847, %v852, 0.0
        %v854 = vsel %vm848, %v851, 0.0
        %vm855 = vcmp.lt.s32.totalorder %v436, 15
        %vm856 = vcmp.lt.s32.totalorder %v437, 15
        %v857 = vrot.slane %v842, 1
        %v858 = vrot.slane %v843, 1
        %v859 = vsel %vm595, %v857, %v858
        %v860 = vsel %vm595, %v858, %v857
        %v861 = vsel %vm855, %v859, 0.0
        %v862 = vsel %vm856, %v860, 0.0
        %v864 = vlaneseq
        %v865 = vshrl.u32 %v864, 7
        %v866 = vsub.s32 0, %v865
        %v867 = vrot.slane %v844, %v866
        %v869 = vmul.f32 %v853, %v867
        %v870 = vmul.f32 %v854, %v867
        %v872 = vlaneseq
        %v873 = vshrl.u32 %v872, 7
        %v874 = vsub.s32 0, %v873
        %v875 = vrot.slane %v845, %v874
        %v877 = vmul.f32 %v842, %v875
        %v878 = vmul.f32 %v843, %v875
        %v879 = vadd.f32 %v869, %v877
        %v880 = vadd.f32 %v870, %v878
        %v882 = vlaneseq
        %v883 = vshrl.u32 %v882, 7
        %v884 = vsub.s32 0, %v883
        %v885 = vrot.slane %v846, %v884
        %v887 = vmul.f32 %v861, %v885
        %v888 = vmul.f32 %v862, %v885
        %v889 = vadd.f32 %v879, %v887
        %v890 = vadd.f32 %v880, %v888
        %v891 = vld [vmem:[#allocation2] sm:$0xff]
        %v892 = vld [vmem:[#allocation2 + $0x8] sm:$0xff]
        %v893 = vadd.f32 %v891, %v889
        %v894 = vadd.f32 %v892, %v890
        %895 = vst.msk [vmem:[#allocation2] sm:$0xff] %vm686, %v893
        %896 = vst.msk [vmem:[#allocation2 + $0x8] sm:$0xff] %vm686, %v894
      $region40: #{tpu_custom_call.1} parent=35 // pred_fallthru
        _
      %p897 = scmp.lt.s32.totalorder %s22, 3
      // Predicated region
      $region41: #{tpu_custom_call.1} parent=35 // pred_check
        %p898 = pneg %p897
      $region42: #{tpu_custom_call.1} parent=35 // pred_check_branch
        %900 = sbr.rel (%p898) target = $region44
      $region43: #{tpu_custom_call.1} parent=35 // pred_region
        %v901 = vld [vmem:[%s405] sm:$0xff]
        %v902 = vld [vmem:[%s405 + $0x8] sm:$0xff]
        %v903 = vld [vmem:[%s766] sm:$0x1]
        %v904 = vld [vmem:[%s768] sm:$0x1]
        %v905 = vld [vmem:[%s770] sm:$0x1]
        %vm906 = vcmp.gt.s32.totalorder %v436, 0
        %vm907 = vcmp.gt.s32.totalorder %v437, 0
        %v908 = vrot.slane %v901, 7
        %v909 = vrot.slane %v902, 7
        %v910 = vsel %vm562, %v908, %v909
        %v911 = vsel %vm562, %v909, %v908
        %v912 = vsel %vm906, %v911, 0.0
        %v913 = vsel %vm907, %v910, 0.0
        %vm914 = vcmp.lt.s32.totalorder %v436, 15
        %vm915 = vcmp.lt.s32.totalorder %v437, 15
        %v916 = vrot.slane %v901, 1
        %v917 = vrot.slane %v902, 1
        %v918 = vsel %vm595, %v916, %v917
        %v919 = vsel %vm595, %v917, %v916
        %v920 = vsel %vm914, %v918, 0.0
        %v921 = vsel %vm915, %v919, 0.0
        %v923 = vlaneseq
        %v924 = vshrl.u32 %v923, 7
        %v925 = vsub.s32 0, %v924
        %v926 = vrot.slane %v903, %v925
        %v928 = vmul.f32 %v912, %v926
        %v929 = vmul.f32 %v913, %v926
        %v931 = vlaneseq
        %v932 = vshrl.u32 %v931, 7
        %v933 = vsub.s32 0, %v932
        %v934 = vrot.slane %v904, %v933
        %v936 = vmul.f32 %v901, %v934
        %v937 = vmul.f32 %v902, %v934
        %v938 = vadd.f32 %v928, %v936
        %v939 = vadd.f32 %v929, %v937
        %v941 = vlaneseq
        %v942 = vshrl.u32 %v941, 7
        %v943 = vsub.s32 0, %v942
        %v944 = vrot.slane %v905, %v943
        %v946 = vmul.f32 %v920, %v944
        %v947 = vmul.f32 %v921, %v944
        %v948 = vadd.f32 %v938, %v946
        %v949 = vadd.f32 %v939, %v947
        %v950 = vld [vmem:[#allocation2 + $0x30] sm:$0xff]
        %v951 = vld [vmem:[#allocation2 + $0x38] sm:$0xff]
        %v952 = vadd.f32 %v950, %v948
        %v953 = vadd.f32 %v951, %v949
        %954 = vst.msk [vmem:[#allocation2 + $0x30] sm:$0xff] %vm686, %v952
        %955 = vst.msk [vmem:[#allocation2 + $0x38] sm:$0xff] %vm686, %v953
      $region44: #{tpu_custom_call.1} parent=35 // pred_fallthru
        _
      %v956 = vld [vmem:[#allocation2] sm:$0xff]
      %v957 = vld [vmem:[#allocation2 + $0x8] sm:$0xff]
      %v958 = vld [vmem:[#allocation2 + $0x10] sm:$0xff]
      %v959 = vld [vmem:[#allocation2 + $0x18] sm:$0xff]
      %v960 = vld [vmem:[#allocation2 + $0x20] sm:$0xff]
      %v961 = vld [vmem:[#allocation2 + $0x28] sm:$0xff]
      %v962 = vld [vmem:[#allocation2 + $0x30] sm:$0xff]
      %v963 = vld [vmem:[#allocation2 + $0x38] sm:$0xff]
      %964 = vst.msk [vmem:[%s425] sm:$0xff] %vm686, %v956
      %965 = vst.msk [vmem:[%s425 + $0x8] sm:$0xff] %vm686, %v957
      %966 = vst.msk [vmem:[%s425 + $0x10] sm:$0xff] %vm686, %v958
      %967 = vst.msk [vmem:[%s425 + $0x18] sm:$0xff] %vm686, %v959
      %968 = vst.msk [vmem:[%s425 + $0x20] sm:$0xff] %vm686, %v960
      %969 = vst.msk [vmem:[%s425 + $0x28] sm:$0xff] %vm686, %v961
      %970 = vst.msk [vmem:[%s425 + $0x30] sm:$0xff] %vm686, %v962
      %971 = vst.msk [vmem:[%s425 + $0x38] sm:$0xff] %vm686, %v963
      %s972 = smul.u32 8, %s22
      %p973 = scmp.lt.s32.totalorder %s20, 1
      %s974 = scalar_select %p973, %s20, 1
      %p975 = scmp.lt.s32.totalorder %s972, 31
      %s976 = scalar_select %p975, %s972, 31
      %p977 = scmp.lt.s32.totalorder %s21, 0
      %s978 = scalar_select %p977, %s21, 0
      %s979 = sadd.s32 %s978, %s976
      %s980 = smul.addr %s974, 32
      %s981 = sadd.s32 %s979, %s980
      %s982 = smul.addr %s981, 8
      %s983 = scalar_lea.vmem %s4, %s982
      // Predicated region
      $region45: #{tpu_custom_call.1} parent=35 // pred_check
        %p984 = pneg %p188
      $region46: #{tpu_custom_call.1} parent=35 // pred_check_branch
        %986 = sbr.rel (%p984) target = $region48
      $region47: #{tpu_custom_call.1} parent=35 // pred_region
        %s987 = smul.u32 8, %s22
      $region48: #{tpu_custom_call.1} parent=35 // pred_fallthru
        _
    $region36: #{tpu_custom_call.1} parent=5 // pred_fallthru
      _
    %p988 = scmp.le.s32.totalorder 2, %s10
    // Predicated region
    $region49: #{tpu_custom_call.1} parent=5 // pred_check
      %p989 = pneg %p988
    $region50: #{tpu_custom_call.1} parent=5 // pred_check_branch
      %991 = sbr.rel (%p989) target = $region52
    $region51: #{tpu_custom_call.1} parent=5 // pred_region
      %s992 = ssub.s32 %s10, 2
      // Predicated region
      $region53: #{tpu_custom_call.1} parent=51 // pred_check
        %p993 = pneg %p194
      $region54: #{tpu_custom_call.1} parent=51 // pred_check_branch
        %995 = sbr.rel (%p993) target = $region56
      $region55: #{tpu_custom_call.1} parent=51 // pred_region
        %s996 = smul.u32 8, %s25
        %p997 = scmp.lt.s32.totalorder %s23, 1
        %s998 = scalar_select %p997, %s23, 1
        %p999 = scmp.lt.s32.totalorder %s996, 31
        %s1000 = scalar_select %p999, %s996, 31
        %p1001 = scmp.lt.s32.totalorder %s24, 0
        %s1002 = scalar_select %p1001, %s24, 0
        %s1003 = sadd.s32 %s1002, %s1000
        %s1004 = smul.addr %s998, 32
        %s1005 = sadd.s32 %s1003, %s1004
        %s1006 = smul.addr %s1005, 8
        %s1007 = scalar_lea.vmem %s4, %s1006
      $region56: #{tpu_custom_call.1} parent=51 // pred_fallthru
        _
    $region52: #{tpu_custom_call.1} parent=5 // pred_fallthru
      _
  $region6: #{tpu_custom_call.1} parent=0 // loop_footer
    %s14 = sadd.s32 1, %s10
  $region7: #{tpu_custom_call.1} parent=0 // loop_footer_branch
    %9 = sbr.rel target = $region3
  $region8: #{tpu_custom_call.1} parent=0 // loop_exit
    _

</llo_original>
